<compile_context>
chip_gen: v7x
topology: tpu7x:2x2x1
jax: 0.10.0
libtpu: 0.0.40
codegen_flags: <defaults>
</compile_context>

<pallas_src>
import functools

import jax
import jax.numpy as jnp
from jax import lax
from jax.experimental import pallas as pl
from jax.experimental.pallas import tpu as pltpu

BN_EPS = 1e-5


# ----------------------------------------------------------------------------
# Fused Pallas kernel (one batch element per grid step)
# ----------------------------------------------------------------------------
def _fused_inverted_residual_kernel(*refs, H, W, K, pad, hidden, lpad,
                                    has_expand, use_res):
    """expand(1x1)+BN+ReLU6 -> depthwise(KxK)+BN+ReLU6 -> project(1x1)+BN
    (+ residual), all on (channels, H*W) slabs with spatial in the lane dim."""
    if has_expand:
        (x_ref, wm_ref, w1_ref, b1_ref, wd_ref, bd_ref, w3_ref, b3_ref,
         o_ref, hpad_ref) = refs
    else:
        (x_ref, wm_ref, wd_ref, bd_ref, w3_ref, b3_ref, o_ref, hpad_ref) = refs

    HW = H * W
    x = x_ref[0]                                   # (Cin, H*W)

    # ---- 1x1 expand (BN scale pre-folded) + bias + ReLU6 : VPU FMAs --------
    if has_expand:
        w1 = w1_ref[...]                           # (hidden, Cin)
        cin = w1.shape[1]
        h = w1[:, 0:1] * x[0:1, :]
        for c in range(1, cin):
            h = h + w1[:, c:c + 1] * x[c:c + 1, :]
        h = jnp.clip(h + b1_ref[...], 0.0, 6.0)
    else:
        h = x                                      # (hidden == Cin, H*W)

    # ---- in-kernel zero padding into a VMEM slab ---------------------------
    # Slab layout along lanes: [lpad zeros | h (flat index h*W + w) | zeros].
    # A depthwise tap (kh, kw) then becomes a single flat lane shift of
    # (kh - pad) * W + (kw - pad); the zero margins implement the row padding.
    hpad_ref[...] = jnp.zeros(hpad_ref.shape, jnp.float32)
    hpad_ref[:, lpad:lpad + HW] = h
    hp = hpad_ref[...]                             # (hidden, 2*lpad + H*W)

    # ---- depthwise KxK (BN scale pre-folded) + bias + ReLU6 ----------------
    wm = wm_ref[...]                               # (K, H*W) w-edge masks
    wd = wd_ref[...]                               # (hidden, K*K)
    acc = jnp.zeros((hidden, HW), jnp.float32)
    for kh in range(K):
        for kw in range(K):
            start = lpad + (kh - pad) * W + (kw - pad)
            src = lax.slice_in_dim(hp, start, start + HW, axis=1)
            if kw != pad:                          # mask cross-row bleed in w
                src = src * wm[kw:kw + 1, :]
            acc = acc + src * wd[:, kh * K + kw:kh * K + kw + 1]
    act = jnp.clip(acc + bd_ref[...], 0.0, 6.0)    # (hidden, H*W)

    # ---- 1x1 projection (BN scale pre-folded) + bias (+ residual) ----------
    w3 = w3_ref[...]                               # (oup, hidden)
    out = w3[:, 0:1] * act[0:1, :]
    for j in range(1, hidden):
        out = out + w3[:, j:j + 1] * act[j:j + 1, :]
    out = out + b3_ref[...]
    if use_res:
        out = out + x                              # static flag: no zeros tensor
    o_ref[0] = out


# ----------------------------------------------------------------------------
# Wrapper
# ----------------------------------------------------------------------------
def inverted_residual_forward(x_nchw, params, *, inp, oup, kernel, stride,
                              expand_ratio):
    pad = 1 if kernel == 3 else 2
    hidden = round(inp * expand_ratio)
    has_expand = expand_ratio != 1
    use_res = (stride == 1) and (inp == oup)

    N, Cin, H, W = x_nchw.shape
    assert Cin == inp
    HW = H * W
    K = kernel

    x = x_nchw.reshape(N, Cin, HW).astype(jnp.float32)   # NCHW, spatial flattened

    # w-edge validity masks, one row per kw tap: row[kw][h*W + w] = 1 iff
    # 0 <= w + (kw - pad) < W.  (Row padding is handled by the slab margins.)
    wpos = jnp.arange(W, dtype=jnp.int32)
    offs = jnp.arange(K, dtype=jnp.int32) - pad
    valid = ((wpos[None, :] + offs[:, None] >= 0)
             & (wpos[None, :] + offs[:, None] < W))       # (K, W)
    wmask = jnp.tile(valid.astype(jnp.float32), (1, H))   # (K, H*W)

    # Fold BatchNorm scales into the conv weights (tiny prep outside the kernel).
    wd_f = (params["wd"] * params["sd"][0]).reshape(K * K, hidden).T  # (hidden, K*K)
    bd_f = params["bd"].reshape(hidden, 1).astype(jnp.float32)
    w3_f = (params["w3"] * params["s3"]).T.astype(jnp.float32)        # (oup, hidden)
    b3_f = params["b3"].reshape(oup, 1).astype(jnp.float32)

    def full2d(a):
        return pl.BlockSpec(a.shape, lambda n: (0, 0))

    args = [x, wmask]
    in_specs = [pl.BlockSpec((1, Cin, HW), lambda n: (n, 0, 0)), full2d(wmask)]
    if has_expand:
        w1_f = (params["w1"] * params["s1"]).T.astype(jnp.float32)    # (hidden, Cin)
        b1_f = params["b1"].reshape(hidden, 1).astype(jnp.float32)
        args += [w1_f, b1_f]
        in_specs += [full2d(w1_f), full2d(b1_f)]
    args += [wd_f.astype(jnp.float32), bd_f, w3_f, b3_f]
    in_specs += [full2d(wd_f), full2d(bd_f), full2d(w3_f), full2d(b3_f)]

    margin = pad * W + pad                      # farthest flat tap shift
    lpad = pl.cdiv(margin, 128) * 128           # lane-aligned slab margin

    kern = functools.partial(
        _fused_inverted_residual_kernel,
        H=H, W=W, K=K, pad=pad, hidden=hidden, lpad=lpad,
        has_expand=has_expand, use_res=use_res)

    out = pl.pallas_call(
        kern,
        out_shape=jax.ShapeDtypeStruct((N, oup, HW), jnp.float32),
        grid=(N,),
        in_specs=in_specs,
        out_specs=pl.BlockSpec((1, oup, HW), lambda n: (n, 0, 0)),
        scratch_shapes=[pltpu.VMEM((hidden, 2 * lpad + HW), jnp.float32)],
        compiler_params=pltpu.CompilerParams(
            dimension_semantics=("parallel",)),
    )(*args)

    out = out.reshape(N, oup, H, W)
    if stride > 1:
        # 1x1 projection / BN are per-pixel, so computing the depthwise at full
        # resolution in-kernel and subsampling here is exact for stride 2.
        out = out[:, :, ::stride, ::stride]
    return out


# ----------------------------------------------------------------------------
# Parameter construction (deterministic, BN kept as raw scale/bias pairs)
# ----------------------------------------------------------------------------
def make_params(key, inp, oup, kernel, expand_ratio):
    hidden = round(inp * expand_ratio)
    ks = jax.random.split(key, 15)

    def bn_fold(k0, k1, k2, k3, c):
        gamma = jax.random.uniform(k0, (c,), minval=0.5, maxval=1.5)
        beta = 0.1 * jax.random.normal(k1, (c,))
        mean = 0.1 * jax.random.normal(k2, (c,))
        var = jax.random.uniform(k3, (c,), minval=0.5, maxval=1.5)
        scale = gamma / jnp.sqrt(var + BN_EPS)
        bias = beta - mean * scale
        return (scale.reshape(1, c).astype(jnp.float32),
                bias.reshape(1, c).astype(jnp.float32))

    params = {}
    if expand_ratio != 1:
        params["w1"] = (0.3 * jax.random.normal(ks[0], (inp, hidden))).astype(jnp.float32)
        params["s1"], params["b1"] = bn_fold(ks[1], ks[2], ks[3], ks[4], hidden)
    params["wd"] = (0.3 * jax.random.normal(ks[5], (kernel, kernel, hidden))).astype(jnp.float32)
    params["sd"], params["bd"] = bn_fold(ks[6], ks[7], ks[8], ks[9], hidden)
    params["w3"] = (0.3 * jax.random.normal(ks[10], (hidden, oup))).astype(jnp.float32)
    params["s3"], params["b3"] = bn_fold(ks[11], ks[12], ks[13], ks[14], oup)
    return params


# ----------------------------------------------------------------------------
# Pure-JAX reference (independent of the Pallas kernel)
# ----------------------------------------------------------------------------
def ref_forward(x_nchw, params, *, inp, oup, kernel, stride, expand_ratio):
    padding = 1 if kernel == 3 else 2
    hidden = round(inp * expand_ratio)
    dn = ("NHWC", "HWIO", "NHWC")
    x = jnp.transpose(x_nchw, (0, 2, 3, 1)).astype(jnp.float32)
    h = x
    if expand_ratio != 1:
        w1 = params["w1"].reshape(1, 1, inp, hidden)
        h = lax.conv_general_dilated(h, w1, (1, 1), "VALID", dimension_numbers=dn)
        h = jnp.clip(h * params["s1"] + params["b1"], 0.0, 6.0)
    wd = params["wd"].reshape(kernel, kernel, 1, hidden)
    h = lax.conv_general_dilated(h, wd, (stride, stride),
                                 [(padding, padding), (padding, padding)],
                                 dimension_numbers=dn, feature_group_count=hidden)
    h = jnp.clip(h * params["sd"] + params["bd"], 0.0, 6.0)
    w3 = params["w3"].reshape(1, 1, hidden, oup)
    h = lax.conv_general_dilated(h, w3, (1, 1), "VALID", dimension_numbers=dn)
    h = h * params["s3"] + params["b3"]
    if stride == 1 and inp == oup:
        h = h + x
    return jnp.transpose(h, (0, 3, 1, 2))


# ----------------------------------------------------------------------------
if __name__ == "__main__":
    inp, oup, kernel, stride, expand_ratio = 4, 4, 3, 1, 2
    N, H, W = 2, 16, 16

    key = jax.random.PRNGKey(0)
    kx, kp = jax.random.split(key)
    x = jax.random.normal(kx, (N, inp, H, W), dtype=jnp.float32)  # PyTorch NCHW
    params = make_params(kp, inp, oup, kernel, expand_ratio)

    fwd = jax.jit(functools.partial(
        inverted_residual_forward, inp=inp, oup=oup, kernel=kernel,
        stride=stride, expand_ratio=expand_ratio))
    out = jax.block_until_ready(fwd(x, params))

    ref = jax.block_until_ready(
        ref_forward(x, params, inp=inp, oup=oup, kernel=kernel,
                    stride=stride, expand_ratio=expand_ratio))

    assert out.shape == (N, oup, H, W), out.shape
    max_err = float(jnp.max(jnp.abs(out - ref)))
    assert jnp.allclose(out, ref, atol=1e-4, rtol=1e-4), max_err

    print("KERNEL_OK")
</pallas_src>

<mosaic_0001>
module attributes {stable_mosaic.version = 11 : i64} {
  func.func @_fused_inverted_residual_kernel(%arg0: i32, %arg1: memref<1x4x256xf32, #tpu.memory_space<vmem>>, %arg2: memref<3x256xf32, #tpu.memory_space<vmem>>, %arg3: memref<8x4xf32, #tpu.memory_space<vmem>>, %arg4: memref<8x1xf32, #tpu.memory_space<vmem>>, %arg5: memref<8x9xf32, #tpu.memory_space<vmem>>, %arg6: memref<8x1xf32, #tpu.memory_space<vmem>>, %arg7: memref<4x8xf32, #tpu.memory_space<vmem>>, %arg8: memref<4x1xf32, #tpu.memory_space<vmem>>, %arg9: memref<1x4x256xf32, #tpu.memory_space<vmem>>, %arg10: memref<8x512xf32, #tpu.memory_space<vmem>>) attributes {dimension_semantics = [#tpu.dimension_semantics<parallel>], iteration_bounds = array<i64: 2>, scalar_prefetch = 0 : i64, scratch_operands = 1 : i64, tpu.core_type = #tpu.core_type<tc>, window_params = [{transform_indices = @transform_0, window_bounds = array<i64: 1, 4, 256>}, {pipeline_mode = #tpu.pipeline_mode<synchronous>, transform_indices = @transform_1, window_bounds = array<i64: 3, 256>}, {pipeline_mode = #tpu.pipeline_mode<synchronous>, transform_indices = @transform_2, window_bounds = array<i64: 8, 4>}, {pipeline_mode = #tpu.pipeline_mode<synchronous>, transform_indices = @transform_3, window_bounds = array<i64: 8, 1>}, {pipeline_mode = #tpu.pipeline_mode<synchronous>, transform_indices = @transform_4, window_bounds = array<i64: 8, 9>}, {pipeline_mode = #tpu.pipeline_mode<synchronous>, transform_indices = @transform_5, window_bounds = array<i64: 8, 1>}, {pipeline_mode = #tpu.pipeline_mode<synchronous>, transform_indices = @transform_6, window_bounds = array<i64: 4, 8>}, {pipeline_mode = #tpu.pipeline_mode<synchronous>, transform_indices = @transform_7, window_bounds = array<i64: 4, 1>}, {transform_indices = @transform_8, window_bounds = array<i64: 1, 4, 256>}]} {
    %c0 = arith.constant 0 : index
    %c0_0 = arith.constant 0 : index
    %c0_1 = arith.constant 0 : index
    %0 = vector.load %arg1[%c0, %c0_0, %c0_1] : memref<1x4x256xf32, #tpu.memory_space<vmem>>, vector<1x4x256xf32>
    %1 = vector.shape_cast %0 : vector<1x4x256xf32> to vector<4x256xf32>
    %c0_2 = arith.constant 0 : index
    %c0_3 = arith.constant 0 : index
    %2 = vector.load %arg3[%c0_2, %c0_3] : memref<8x4xf32, #tpu.memory_space<vmem>>, vector<8x4xf32>
    %3 = vector.extract_strided_slice %2 {offsets = [0, 0], sizes = [8, 1], strides = [1, 1]} : vector<8x4xf32> to vector<8x1xf32>
    %4 = vector.extract_strided_slice %1 {offsets = [0, 0], sizes = [1, 256], strides = [1, 1]} : vector<4x256xf32> to vector<1x256xf32>
    %5 = vector.broadcast %3 : vector<8x1xf32> to vector<8x256xf32>
    %6 = vector.broadcast %4 : vector<1x256xf32> to vector<8x256xf32>
    %7 = arith.mulf %5, %6 : vector<8x256xf32>
    %8 = vector.extract_strided_slice %2 {offsets = [0, 1], sizes = [8, 1], strides = [1, 1]} : vector<8x4xf32> to vector<8x1xf32>
    %9 = vector.extract_strided_slice %1 {offsets = [1, 0], sizes = [1, 256], strides = [1, 1]} : vector<4x256xf32> to vector<1x256xf32>
    %10 = vector.broadcast %8 : vector<8x1xf32> to vector<8x256xf32>
    %11 = vector.broadcast %9 : vector<1x256xf32> to vector<8x256xf32>
    %12 = arith.mulf %10, %11 : vector<8x256xf32>
    %13 = arith.addf %7, %12 : vector<8x256xf32>
    %14 = vector.extract_strided_slice %2 {offsets = [0, 2], sizes = [8, 1], strides = [1, 1]} : vector<8x4xf32> to vector<8x1xf32>
    %15 = vector.extract_strided_slice %1 {offsets = [2, 0], sizes = [1, 256], strides = [1, 1]} : vector<4x256xf32> to vector<1x256xf32>
    %16 = vector.broadcast %14 : vector<8x1xf32> to vector<8x256xf32>
    %17 = vector.broadcast %15 : vector<1x256xf32> to vector<8x256xf32>
    %18 = arith.mulf %16, %17 : vector<8x256xf32>
    %19 = arith.addf %13, %18 : vector<8x256xf32>
    %20 = vector.extract_strided_slice %2 {offsets = [0, 3], sizes = [8, 1], strides = [1, 1]} : vector<8x4xf32> to vector<8x1xf32>
    %21 = vector.extract_strided_slice %1 {offsets = [3, 0], sizes = [1, 256], strides = [1, 1]} : vector<4x256xf32> to vector<1x256xf32>
    %22 = vector.broadcast %20 : vector<8x1xf32> to vector<8x256xf32>
    %23 = vector.broadcast %21 : vector<1x256xf32> to vector<8x256xf32>
    %24 = arith.mulf %22, %23 : vector<8x256xf32>
    %25 = arith.addf %19, %24 : vector<8x256xf32>
    %c0_4 = arith.constant 0 : index
    %c0_5 = arith.constant 0 : index
    %26 = vector.load %arg4[%c0_4, %c0_5] : memref<8x1xf32, #tpu.memory_space<vmem>>, vector<8x1xf32>
    %27 = vector.broadcast %26 : vector<8x1xf32> to vector<8x256xf32>
    %28 = arith.addf %25, %27 : vector<8x256xf32>
    %cst = arith.constant 0.000000e+00 : f32
    %cst_6 = arith.constant 6.000000e+00 : f32
    %29 = vector.broadcast %cst : f32 to vector<8x256xf32>
    %30 = arith.maximumf %29, %28 : vector<8x256xf32>
    %31 = vector.broadcast %cst_6 : f32 to vector<8x256xf32>
    %32 = arith.minimumf %31, %30 : vector<8x256xf32>
    %cst_7 = arith.constant 0.000000e+00 : f32
    %33 = vector.broadcast %cst_7 : f32 to vector<8x512xf32>
    %c0_8 = arith.constant 0 : index
    %c0_9 = arith.constant 0 : index
    %34 = vector.load %arg10[%c0_8, %c0_9] : memref<8x512xf32, #tpu.memory_space<vmem>>, vector<8x512xf32>
    tpu.vector_store %arg10[%c0_8, %c0_9], %33 {strides = array<i32>} : memref<8x512xf32, #tpu.memory_space<vmem>>, vector<8x512xf32>,
    %c0_10 = arith.constant 0 : index
    %c128 = arith.constant 128 : index
    %35 = vector.load %arg10[%c0_10, %c128] : memref<8x512xf32, #tpu.memory_space<vmem>>, vector<8x256xf32>
    tpu.vector_store %arg10[%c0_10, %c128], %32 {strides = array<i32>} : memref<8x512xf32, #tpu.memory_space<vmem>>, vector<8x256xf32>,
    %c0_11 = arith.constant 0 : index
    %c0_12 = arith.constant 0 : index
    %36 = vector.load %arg10[%c0_11, %c0_12] : memref<8x512xf32, #tpu.memory_space<vmem>>, vector<8x512xf32>
    %c0_13 = arith.constant 0 : index
    %c0_14 = arith.constant 0 : index
    %37 = vector.load %arg2[%c0_13, %c0_14] : memref<3x256xf32, #tpu.memory_space<vmem>>, vector<3x256xf32>
    %c0_15 = arith.constant 0 : index
    %c0_16 = arith.constant 0 : index
    %38 = vector.load %arg5[%c0_15, %c0_16] : memref<8x9xf32, #tpu.memory_space<vmem>>, vector<8x9xf32>
    %cst_17 = arith.constant 0.000000e+00 : f32
    %39 = vector.broadcast %cst_17 : f32 to vector<8x256xf32>
    %40 = vector.extract_strided_slice %36 {offsets = [0, 111], sizes = [8, 256], strides = [1, 1]} : vector<8x512xf32> to vector<8x256xf32>
    %41 = vector.extract_strided_slice %37 {offsets = [0, 0], sizes = [1, 256], strides = [1, 1]} : vector<3x256xf32> to vector<1x256xf32>
    %42 = vector.broadcast %41 : vector<1x256xf32> to vector<8x256xf32>
    %43 = arith.mulf %40, %42 : vector<8x256xf32>
    %44 = vector.extract_strided_slice %38 {offsets = [0, 0], sizes = [8, 1], strides = [1, 1]} : vector<8x9xf32> to vector<8x1xf32>
    %45 = vector.broadcast %44 : vector<8x1xf32> to vector<8x256xf32>
    %46 = arith.mulf %43, %45 : vector<8x256xf32>
    %47 = arith.addf %39, %46 : vector<8x256xf32>
    %48 = vector.extract_strided_slice %36 {offsets = [0, 112], sizes = [8, 256], strides = [1, 1]} : vector<8x512xf32> to vector<8x256xf32>
    %49 = vector.extract_strided_slice %38 {offsets = [0, 1], sizes = [8, 1], strides = [1, 1]} : vector<8x9xf32> to vector<8x1xf32>
    %50 = vector.broadcast %49 : vector<8x1xf32> to vector<8x256xf32>
    %51 = arith.mulf %48, %50 : vector<8x256xf32>
    %52 = arith.addf %47, %51 : vector<8x256xf32>
    %53 = vector.extract_strided_slice %36 {offsets = [0, 113], sizes = [8, 256], strides = [1, 1]} : vector<8x512xf32> to vector<8x256xf32>
    %54 = vector.extract_strided_slice %37 {offsets = [2, 0], sizes = [1, 256], strides = [1, 1]} : vector<3x256xf32> to vector<1x256xf32>
    %55 = vector.broadcast %54 : vector<1x256xf32> to vector<8x256xf32>
    %56 = arith.mulf %53, %55 : vector<8x256xf32>
    %57 = vector.extract_strided_slice %38 {offsets = [0, 2], sizes = [8, 1], strides = [1, 1]} : vector<8x9xf32> to vector<8x1xf32>
    %58 = vector.broadcast %57 : vector<8x1xf32> to vector<8x256xf32>
    %59 = arith.mulf %56, %58 : vector<8x256xf32>
    %60 = arith.addf %52, %59 : vector<8x256xf32>
    %61 = vector.extract_strided_slice %36 {offsets = [0, 127], sizes = [8, 256], strides = [1, 1]} : vector<8x512xf32> to vector<8x256xf32>
    %62 = vector.extract_strided_slice %37 {offsets = [0, 0], sizes = [1, 256], strides = [1, 1]} : vector<3x256xf32> to vector<1x256xf32>
    %63 = vector.broadcast %62 : vector<1x256xf32> to vector<8x256xf32>
    %64 = arith.mulf %61, %63 : vector<8x256xf32>
    %65 = vector.extract_strided_slice %38 {offsets = [0, 3], sizes = [8, 1], strides = [1, 1]} : vector<8x9xf32> to vector<8x1xf32>
    %66 = vector.broadcast %65 : vector<8x1xf32> to vector<8x256xf32>
    %67 = arith.mulf %64, %66 : vector<8x256xf32>
    %68 = arith.addf %60, %67 : vector<8x256xf32>
    %69 = vector.extract_strided_slice %36 {offsets = [0, 128], sizes = [8, 256], strides = [1, 1]} : vector<8x512xf32> to vector<8x256xf32>
    %70 = vector.extract_strided_slice %38 {offsets = [0, 4], sizes = [8, 1], strides = [1, 1]} : vector<8x9xf32> to vector<8x1xf32>
    %71 = vector.broadcast %70 : vector<8x1xf32> to vector<8x256xf32>
    %72 = arith.mulf %69, %71 : vector<8x256xf32>
    %73 = arith.addf %68, %72 : vector<8x256xf32>
    %74 = vector.extract_strided_slice %36 {offsets = [0, 129], sizes = [8, 256], strides = [1, 1]} : vector<8x512xf32> to vector<8x256xf32>
    %75 = vector.extract_strided_slice %37 {offsets = [2, 0], sizes = [1, 256], strides = [1, 1]} : vector<3x256xf32> to vector<1x256xf32>
    %76 = vector.broadcast %75 : vector<1x256xf32> to vector<8x256xf32>
    %77 = arith.mulf %74, %76 : vector<8x256xf32>
    %78 = vector.extract_strided_slice %38 {offsets = [0, 5], sizes = [8, 1], strides = [1, 1]} : vector<8x9xf32> to vector<8x1xf32>
    %79 = vector.broadcast %78 : vector<8x1xf32> to vector<8x256xf32>
    %80 = arith.mulf %77, %79 : vector<8x256xf32>
    %81 = arith.addf %73, %80 : vector<8x256xf32>
    %82 = vector.extract_strided_slice %36 {offsets = [0, 143], sizes = [8, 256], strides = [1, 1]} : vector<8x512xf32> to vector<8x256xf32>
    %83 = vector.extract_strided_slice %37 {offsets = [0, 0], sizes = [1, 256], strides = [1, 1]} : vector<3x256xf32> to vector<1x256xf32>
    %84 = vector.broadcast %83 : vector<1x256xf32> to vector<8x256xf32>
    %85 = arith.mulf %82, %84 : vector<8x256xf32>
    %86 = vector.extract_strided_slice %38 {offsets = [0, 6], sizes = [8, 1], strides = [1, 1]} : vector<8x9xf32> to vector<8x1xf32>
    %87 = vector.broadcast %86 : vector<8x1xf32> to vector<8x256xf32>
    %88 = arith.mulf %85, %87 : vector<8x256xf32>
    %89 = arith.addf %81, %88 : vector<8x256xf32>
    %90 = vector.extract_strided_slice %36 {offsets = [0, 144], sizes = [8, 256], strides = [1, 1]} : vector<8x512xf32> to vector<8x256xf32>
    %91 = vector.extract_strided_slice %38 {offsets = [0, 7], sizes = [8, 1], strides = [1, 1]} : vector<8x9xf32> to vector<8x1xf32>
    %92 = vector.broadcast %91 : vector<8x1xf32> to vector<8x256xf32>
    %93 = arith.mulf %90, %92 : vector<8x256xf32>
    %94 = arith.addf %89, %93 : vector<8x256xf32>
    %95 = vector.extract_strided_slice %36 {offsets = [0, 145], sizes = [8, 256], strides = [1, 1]} : vector<8x512xf32> to vector<8x256xf32>
    %96 = vector.extract_strided_slice %37 {offsets = [2, 0], sizes = [1, 256], strides = [1, 1]} : vector<3x256xf32> to vector<1x256xf32>
    %97 = vector.broadcast %96 : vector<1x256xf32> to vector<8x256xf32>
    %98 = arith.mulf %95, %97 : vector<8x256xf32>
    %99 = vector.extract_strided_slice %38 {offsets = [0, 8], sizes = [8, 1], strides = [1, 1]} : vector<8x9xf32> to vector<8x1xf32>
    %100 = vector.broadcast %99 : vector<8x1xf32> to vector<8x256xf32>
    %101 = arith.mulf %98, %100 : vector<8x256xf32>
    %102 = arith.addf %94, %101 : vector<8x256xf32>
    %c0_18 = arith.constant 0 : index
    %c0_19 = arith.constant 0 : index
    %103 = vector.load %arg6[%c0_18, %c0_19] : memref<8x1xf32, #tpu.memory_space<vmem>>, vector<8x1xf32>
    %104 = vector.broadcast %103 : vector<8x1xf32> to vector<8x256xf32>
    %105 = arith.addf %102, %104 : vector<8x256xf32>
    %cst_20 = arith.constant 0.000000e+00 : f32
    %cst_21 = arith.constant 6.000000e+00 : f32
    %106 = vector.broadcast %cst_20 : f32 to vector<8x256xf32>
    %107 = arith.maximumf %106, %105 : vector<8x256xf32>
    %108 = vector.broadcast %cst_21 : f32 to vector<8x256xf32>
    %109 = arith.minimumf %108, %107 : vector<8x256xf32>
    %c0_22 = arith.constant 0 : index
    %c0_23 = arith.constant 0 : index
    %110 = vector.load %arg7[%c0_22, %c0_23] : memref<4x8xf32, #tpu.memory_space<vmem>>, vector<4x8xf32>
    %111 = vector.extract_strided_slice %110 {offsets = [0, 0], sizes = [4, 1], strides = [1, 1]} : vector<4x8xf32> to vector<4x1xf32>
    %112 = vector.extract_strided_slice %109 {offsets = [0, 0], sizes = [1, 256], strides = [1, 1]} : vector<8x256xf32> to vector<1x256xf32>
    %113 = vector.broadcast %111 : vector<4x1xf32> to vector<4x256xf32>
    %114 = vector.broadcast %112 : vector<1x256xf32> to vector<4x256xf32>
    %115 = arith.mulf %113, %114 : vector<4x256xf32>
    %116 = vector.extract_strided_slice %110 {offsets = [0, 1], sizes = [4, 1], strides = [1, 1]} : vector<4x8xf32> to vector<4x1xf32>
    %117 = vector.extract_strided_slice %109 {offsets = [1, 0], sizes = [1, 256], strides = [1, 1]} : vector<8x256xf32> to vector<1x256xf32>
    %118 = vector.broadcast %116 : vector<4x1xf32> to vector<4x256xf32>
    %119 = vector.broadcast %117 : vector<1x256xf32> to vector<4x256xf32>
    %120 = arith.mulf %118, %119 : vector<4x256xf32>
    %121 = arith.addf %115, %120 : vector<4x256xf32>
    %122 = vector.extract_strided_slice %110 {offsets = [0, 2], sizes = [4, 1], strides = [1, 1]} : vector<4x8xf32> to vector<4x1xf32>
    %123 = vector.extract_strided_slice %109 {offsets = [2, 0], sizes = [1, 256], strides = [1, 1]} : vector<8x256xf32> to vector<1x256xf32>
    %124 = vector.broadcast %122 : vector<4x1xf32> to vector<4x256xf32>
    %125 = vector.broadcast %123 : vector<1x256xf32> to vector<4x256xf32>
    %126 = arith.mulf %124, %125 : vector<4x256xf32>
    %127 = arith.addf %121, %126 : vector<4x256xf32>
    %128 = vector.extract_strided_slice %110 {offsets = [0, 3], sizes = [4, 1], strides = [1, 1]} : vector<4x8xf32> to vector<4x1xf32>
    %129 = vector.extract_strided_slice %109 {offsets = [3, 0], sizes = [1, 256], strides = [1, 1]} : vector<8x256xf32> to vector<1x256xf32>
    %130 = vector.broadcast %128 : vector<4x1xf32> to vector<4x256xf32>
    %131 = vector.broadcast %129 : vector<1x256xf32> to vector<4x256xf32>
    %132 = arith.mulf %130, %131 : vector<4x256xf32>
    %133 = arith.addf %127, %132 : vector<4x256xf32>
    %134 = vector.extract_strided_slice %110 {offsets = [0, 4], sizes = [4, 1], strides = [1, 1]} : vector<4x8xf32> to vector<4x1xf32>
    %135 = vector.extract_strided_slice %109 {offsets = [4, 0], sizes = [1, 256], strides = [1, 1]} : vector<8x256xf32> to vector<1x256xf32>
    %136 = vector.broadcast %134 : vector<4x1xf32> to vector<4x256xf32>
    %137 = vector.broadcast %135 : vector<1x256xf32> to vector<4x256xf32>
    %138 = arith.mulf %136, %137 : vector<4x256xf32>
    %139 = arith.addf %133, %138 : vector<4x256xf32>
    %140 = vector.extract_strided_slice %110 {offsets = [0, 5], sizes = [4, 1], strides = [1, 1]} : vector<4x8xf32> to vector<4x1xf32>
    %141 = vector.extract_strided_slice %109 {offsets = [5, 0], sizes = [1, 256], strides = [1, 1]} : vector<8x256xf32> to vector<1x256xf32>
    %142 = vector.broadcast %140 : vector<4x1xf32> to vector<4x256xf32>
    %143 = vector.broadcast %141 : vector<1x256xf32> to vector<4x256xf32>
    %144 = arith.mulf %142, %143 : vector<4x256xf32>
    %145 = arith.addf %139, %144 : vector<4x256xf32>
    %146 = vector.extract_strided_slice %110 {offsets = [0, 6], sizes = [4, 1], strides = [1, 1]} : vector<4x8xf32> to vector<4x1xf32>
    %147 = vector.extract_strided_slice %109 {offsets = [6, 0], sizes = [1, 256], strides = [1, 1]} : vector<8x256xf32> to vector<1x256xf32>
    %148 = vector.broadcast %146 : vector<4x1xf32> to vector<4x256xf32>
    %149 = vector.broadcast %147 : vector<1x256xf32> to vector<4x256xf32>
    %150 = arith.mulf %148, %149 : vector<4x256xf32>
    %151 = arith.addf %145, %150 : vector<4x256xf32>
    %152 = vector.extract_strided_slice %110 {offsets = [0, 7], sizes = [4, 1], strides = [1, 1]} : vector<4x8xf32> to vector<4x1xf32>
    %153 = vector.extract_strided_slice %109 {offsets = [7, 0], sizes = [1, 256], strides = [1, 1]} : vector<8x256xf32> to vector<1x256xf32>
    %154 = vector.broadcast %152 : vector<4x1xf32> to vector<4x256xf32>
    %155 = vector.broadcast %153 : vector<1x256xf32> to vector<4x256xf32>
    %156 = arith.mulf %154, %155 : vector<4x256xf32>
    %157 = arith.addf %151, %156 : vector<4x256xf32>
    %c0_24 = arith.constant 0 : index
    %c0_25 = arith.constant 0 : index
    %158 = vector.load %arg8[%c0_24, %c0_25] : memref<4x1xf32, #tpu.memory_space<vmem>>, vector<4x1xf32>
    %159 = vector.broadcast %158 : vector<4x1xf32> to vector<4x256xf32>
    %160 = arith.addf %157, %159 : vector<4x256xf32>
    %161 = arith.addf %160, %1 : vector<4x256xf32>
    %c0_26 = arith.constant 0 : index
    %c0_27 = arith.constant 0 : index
    %c0_28 = arith.constant 0 : index
    %162 = vector.load %arg9[%c0_26, %c0_27, %c0_28] : memref<1x4x256xf32, #tpu.memory_space<vmem>>, vector<1x4x256xf32>
    %163 = vector.shape_cast %162 : vector<1x4x256xf32> to vector<4x256xf32>
    %164 = vector.shape_cast %161 : vector<4x256xf32> to vector<1x4x256xf32>
    tpu.vector_store %arg9[%c0_26, %c0_27, %c0_28], %164 {strides = array<i32>} : memref<1x4x256xf32, #tpu.memory_space<vmem>>, vector<1x4x256xf32>,
    return
  }
  func.func @transform_0(%arg0: i32) -> (i32, i32, i32) {
    %c0_i32 = arith.constant 0 : i32
    %c0_i32_0 = arith.constant 0 : i32
    %c0_i32_1 = arith.constant 0 : i32
    return %arg0, %c0_i32, %c0_i32_0 : i32, i32, i32
  }
  func.func @transform_1(%arg0: i32) -> (i32, i32) {
    %c0_i32 = arith.constant 0 : i32
    %c0_i32_0 = arith.constant 0 : i32
    %c0_i32_1 = arith.constant 0 : i32
    return %c0_i32, %c0_i32_0 : i32, i32
  }
  func.func @transform_2(%arg0: i32) -> (i32, i32) {
    %c0_i32 = arith.constant 0 : i32
    %c0_i32_0 = arith.constant 0 : i32
    %c0_i32_1 = arith.constant 0 : i32
    return %c0_i32, %c0_i32_0 : i32, i32
  }
  func.func @transform_3(%arg0: i32) -> (i32, i32) {
    %c0_i32 = arith.constant 0 : i32
    %c0_i32_0 = arith.constant 0 : i32
    %c0_i32_1 = arith.constant 0 : i32
    return %c0_i32, %c0_i32_0 : i32, i32
  }
  func.func @transform_4(%arg0: i32) -> (i32, i32) {
    %c0_i32 = arith.constant 0 : i32
    %c0_i32_0 = arith.constant 0 : i32
    %c0_i32_1 = arith.constant 0 : i32
    return %c0_i32, %c0_i32_0 : i32, i32
  }
  func.func @transform_5(%arg0: i32) -> (i32, i32) {
    %c0_i32 = arith.constant 0 : i32
    %c0_i32_0 = arith.constant 0 : i32
    %c0_i32_1 = arith.constant 0 : i32
    return %c0_i32, %c0_i32_0 : i32, i32
  }
  func.func @transform_6(%arg0: i32) -> (i32, i32) {
    %c0_i32 = arith.constant 0 : i32
    %c0_i32_0 = arith.constant 0 : i32
    %c0_i32_1 = arith.constant 0 : i32
    return %c0_i32, %c0_i32_0 : i32, i32
  }
  func.func @transform_7(%arg0: i32) -> (i32, i32) {
    %c0_i32 = arith.constant 0 : i32
    %c0_i32_0 = arith.constant 0 : i32
    %c0_i32_1 = arith.constant 0 : i32
    return %c0_i32, %c0_i32_0 : i32, i32
  }
  func.func @transform_8(%arg0: i32) -> (i32, i32, i32) {
    %c0_i32 = arith.constant 0 : i32
    %c0_i32_0 = arith.constant 0 : i32
    %c0_i32_1 = arith.constant 0 : i32
    return %arg0, %c0_i32, %c0_i32_0 : i32, i32, i32
  }
}

</mosaic_0001>

<llo_original>
// kernel: tile.9
$region0: #{tile.9}
  %s0 = inlined_call_operand.vmem [shape: f32[3,16,16], index: 0, kind: input, shape index: {}]
  %s1 = inlined_call_operand.vmem [shape: f32[3,256], index: 1, kind: output, shape index: {}]
  $region1: #{tile.9} parent=0
    #allocation0 [shape = 'u8[8192]{0}', space=vmem, size = 0x2000, scoped, tag = 'scoped mem for output reshape']
    %v2 = vld [vmem:[%s0] ss:$8 sm:$0xf]
    %s3 = smov 48
    %v4 = vld [vmem:[%s0] ss:$8 sm:%s3]
    %vm5 = vcmask 1045508
    %v6 = vsel %vm5, %v4, %v2
    %vm7 = vcmask 130048
    %8 = vst.msk [vmem:[#allocation0] ss:$8 sm:$0x3] %vm7, %v6
    %s9 = scalar_lea.vmem [#allocation0], 4294967281
    %10 = vst.msk [vmem:[%s9] ss:$8 sm:$0xc] %vm7, %v6
    %s11 = scalar_lea.vmem [#allocation0], 4294967266
    %12 = vst.msk [vmem:[%s11] ss:$8 sm:$0x30] %vm7, %v6
    %s13 = scalar_lea.vmem %s0, 7
    %s14 = smov 3
    %v15 = vld [vmem:[%s13] ss:$16 sm:%s14]
    %s16 = scalar_lea.vmem %s0, 87
    %s17 = smov 12
    %v18 = vld [vmem:[%s16] ss:$-24 sm:%s17]
    %vm19 = vcmask 1043458
    %v20 = vsel %vm19, %v18, %v15
    %s21 = scalar_lea.vmem %s0, 4294967263
    %s22 = smov 48
    %v23 = vld [vmem:[%s21] ss:$16 sm:%s22]
    %vm24 = vcmask 1045508
    %v25 = vsel %vm24, %v23, %v20
    %26 = vrot.lane.b32.xlu0 %v25, 112
    %v27 = vpop.permute.xlu0 %26
    %vm28 = vcmask 1048448
    %29 = vst.msk [vmem:[#allocation0] sm:$0x7] %vm28, %v27
    %s30 = scalar_lea.vmem [#allocation0], 5
    %31 = vst.msk [vmem:[%s30] sm:$0x38] %vm28, %v27
    %s32 = scalar_lea.vmem %s0, 6
    %s33 = smov 3
    %v34 = vld [vmem:[%s32] ss:$16 sm:%s33]
    %s35 = scalar_lea.vmem %s0, 86
    %s36 = smov 12
    %v37 = vld [vmem:[%s35] ss:$-24 sm:%s36]
    %vm38 = vcmask 1043458
    %v39 = vsel %vm38, %v37, %v34
    %s40 = scalar_lea.vmem %s0, 4294967262
    %s41 = smov 48
    %v42 = vld [vmem:[%s40] ss:$16 sm:%s41]
    %vm43 = vcmask 1045508
    %v44 = vsel %vm43, %v42, %v39
    %45 = vrot.lane.b32.xlu0 %v44, 96
    %v46 = vpop.permute.xlu0 %45
    %vm47 = vcmask 917248
    %48 = vst.msk [vmem:[#allocation0] sm:$0x7] %vm47, %v46
    %s49 = scalar_lea.vmem [#allocation0], 5
    %50 = vst.msk [vmem:[%s49] sm:$0x38] %vm47, %v46
    %s51 = scalar_lea.vmem %s0, 5
    %s52 = smov 3
    %v53 = vld [vmem:[%s51] ss:$16 sm:%s52]
    %s54 = scalar_lea.vmem %s0, 85
    %s55 = smov 12
    %v56 = vld [vmem:[%s54] ss:$-24 sm:%s55]
    %vm57 = vcmask 1043458
    %v58 = vsel %vm57, %v56, %v53
    %s59 = scalar_lea.vmem %s0, 4294967261
    %s60 = smov 48
    %v61 = vld [vmem:[%s59] ss:$16 sm:%s60]
    %vm62 = vcmask 1045508
    %v63 = vsel %vm62, %v61, %v58
    %64 = vrot.lane.b32.xlu0 %v63, 80
    %v65 = vpop.permute.xlu0 %64
    %vm66 = vcmask 786048
    %67 = vst.msk [vmem:[#allocation0] sm:$0x7] %vm66, %v65
    %s68 = scalar_lea.vmem [#allocation0], 5
    %69 = vst.msk [vmem:[%s68] sm:$0x38] %vm66, %v65
    %s70 = scalar_lea.vmem %s0, 4
    %s71 = smov 3
    %v72 = vld [vmem:[%s70] ss:$16 sm:%s71]
    %s73 = scalar_lea.vmem %s0, 84
    %s74 = smov 12
    %v75 = vld [vmem:[%s73] ss:$-24 sm:%s74]
    %vm76 = vcmask 1043458
    %v77 = vsel %vm76, %v75, %v72
    %s78 = scalar_lea.vmem %s0, 4294967260
    %s79 = smov 48
    %v80 = vld [vmem:[%s78] ss:$16 sm:%s79]
    %vm81 = vcmask 1045508
    %v82 = vsel %vm81, %v80, %v77
    %83 = vrot.lane.b32.xlu0 %v82, 64
    %v84 = vpop.permute.xlu0 %83
    %vm85 = vcmask 654848
    %86 = vst.msk [vmem:[#allocation0] sm:$0x7] %vm85, %v84
    %s87 = scalar_lea.vmem [#allocation0], 5
    %88 = vst.msk [vmem:[%s87] sm:$0x38] %vm85, %v84
    %s89 = scalar_lea.vmem %s0, 3
    %s90 = smov 3
    %v91 = vld [vmem:[%s89] ss:$16 sm:%s90]
    %s92 = scalar_lea.vmem %s0, 83
    %s93 = smov 12
    %v94 = vld [vmem:[%s92] ss:$-24 sm:%s93]
    %vm95 = vcmask 1043458
    %v96 = vsel %vm95, %v94, %v91
    %s97 = scalar_lea.vmem %s0, 4294967259
    %s98 = smov 48
    %v99 = vld [vmem:[%s97] ss:$16 sm:%s98]
    %vm100 = vcmask 1045508
    %v101 = vsel %vm100, %v99, %v96
    %102 = vrot.lane.b32.xlu0 %v101, 48
    %v103 = vpop.permute.xlu0 %102
    %vm104 = vcmask 523648
    %105 = vst.msk [vmem:[#allocation0] sm:$0x7] %vm104, %v103
    %s106 = scalar_lea.vmem [#allocation0], 5
    %107 = vst.msk [vmem:[%s106] sm:$0x38] %vm104, %v103
    %s108 = scalar_lea.vmem %s0, 2
    %s109 = smov 3
    %v110 = vld [vmem:[%s108] ss:$16 sm:%s109]
    %s111 = scalar_lea.vmem %s0, 82
    %s112 = smov 12
    %v113 = vld [vmem:[%s111] ss:$-24 sm:%s112]
    %vm114 = vcmask 1043458
    %v115 = vsel %vm114, %v113, %v110
    %s116 = scalar_lea.vmem %s0, 4294967258
    %s117 = smov 48
    %v118 = vld [vmem:[%s116] ss:$16 sm:%s117]
    %vm119 = vcmask 1045508
    %v120 = vsel %vm119, %v118, %v115
    %121 = vrot.lane.b32.xlu0 %v120, 32
    %v122 = vpop.permute.xlu0 %121
    %vm123 = vcmask 392448
    %124 = vst.msk [vmem:[#allocation0] sm:$0x7] %vm123, %v122
    %s125 = scalar_lea.vmem [#allocation0], 5
    %126 = vst.msk [vmem:[%s125] sm:$0x38] %vm123, %v122
    %s127 = scalar_lea.vmem %s0, 1
    %s128 = smov 3
    %v129 = vld [vmem:[%s127] ss:$16 sm:%s128]
    %s130 = scalar_lea.vmem %s0, 81
    %s131 = smov 12
    %v132 = vld [vmem:[%s130] ss:$-24 sm:%s131]
    %vm133 = vcmask 1043458
    %v134 = vsel %vm133, %v132, %v129
    %s135 = scalar_lea.vmem %s0, 4294967257
    %s136 = smov 48
    %v137 = vld [vmem:[%s135] ss:$16 sm:%s136]
    %vm138 = vcmask 1045508
    %v139 = vsel %vm138, %v137, %v134
    %140 = vrot.lane.b32.xlu0 %v139, 16
    %v141 = vpop.permute.xlu0 %140
    %vm142 = vcmask 261248
    %143 = vst.msk [vmem:[#allocation0] sm:$0x7] %vm142, %v141
    %s144 = scalar_lea.vmem [#allocation0], 5
    %145 = vst.msk [vmem:[%s144] sm:$0x38] %vm142, %v141
    %s147 = sshllo.u32 0, 4
    %v149 = vld [vmem:[#allocation0] sm:%s147]
    %s150 = sshllo.u32 0, 4
    %151 = vst [vmem:[%s1] sm:%s150] %v149
    %s152 = scalar_lea.vmem [#allocation0], 8
    %v153 = vld [vmem:[%s152] sm:%s147]
    %s154 = sshllo.u32 0, 4
    %s155 = scalar_lea.vmem %s1, 4
    %156 = vst [vmem:[%s155] sm:%s154] %v153

// kernel: inverted_residual_forward.1
$region0: #{inverted_residual_forward.1}
  #allocation0 [shape = 'u32[]', space=smem, size = 0x4, offset = 0x4, fixed_abs, tag = 'smem constant byte address 0x4 - core index']
  #allocation1 [shape = 'u32[144,128]{1,0:T(1,128)}', space=vmem, size = 0x12000, scoped, tag = 'internal scratch']
  #allocation2 [shape = 'f32[8,512]{1,0:T(8,128)}', space=vmem, size = 0x4000, scoped, tag = 'scratch operand']
  %s0 = inlined_call_operand.vmem [shape: f32[2,4,256], index: 0, kind: input, shape index: {}]
  %s1 = inlined_call_operand.vmem [shape: f32[3,256], index: 1, kind: input, shape index: {}]
  %s2 = inlined_call_operand.vmem [shape: f32[8,4], index: 2, kind: input, shape index: {}]
  %s3 = inlined_call_operand.vmem [shape: f32[8,1], index: 3, kind: input, shape index: {}]
  %s4 = inlined_call_operand.vmem [shape: f32[8,9], index: 4, kind: input, shape index: {}]
  %s5 = inlined_call_operand.vmem [shape: f32[8,1], index: 5, kind: input, shape index: {}]
  %s6 = inlined_call_operand.vmem [shape: f32[4,8], index: 6, kind: input, shape index: {}]
  %s7 = inlined_call_operand.vmem [shape: f32[4,1], index: 7, kind: input, shape index: {}]
  %s8 = inlined_call_operand.vmem [shape: f32[2,4,256], index: 8, kind: output, shape index: {}]
  %s9 = sld [smem:[#allocation0]]
  $region65: #{inverted_residual_forward.1} parent=0
    _
  %s11 = ssub.s32 1, %s9
  %s12 = scalar_select 0, %s11, %s9
  loop: start=0, step=1, limit=4
  $region2: #{inverted_residual_forward.1} parent=0 // loop_pre_header
    _
  $region3: #{inverted_residual_forward.1} parent=0 // loop_header
    %s14 = sphi 0, %s18
    %p15 = scmp.ge.s32.totalorder %s14, 4
    %s24 = sphi 0, %s26
    %s27 = sphi 0, %s24
    %s28 = sphi 0, %s27
    %s44 = sphi 0, %s28
    %s48 = sphi 0, %s48
    %s50 = sphi 0, %s48
    %s51 = sphi 0, %s50
    %s65 = sphi 0, %s51
    %s69 = sphi 0, %s69
    %s71 = sphi 0, %s69
    %s72 = sphi 0, %s71
    %s86 = sphi 0, %s72
    %s90 = sphi 0, %s90
    %s92 = sphi 0, %s90
    %s93 = sphi 0, %s92
    %s107 = sphi 0, %s93
    %s111 = sphi 0, %s111
    %s113 = sphi 0, %s111
    %s114 = sphi 0, %s113
    %s128 = sphi 0, %s114
    %s132 = sphi 0, %s132
    %s134 = sphi 0, %s132
    %s135 = sphi 0, %s134
    %s149 = sphi 0, %s135
    %s153 = sphi 0, %s153
    %s155 = sphi 0, %s153
    %s156 = sphi 0, %s155
    %s170 = sphi 0, %s156
    %s174 = sphi 0, %s174
    %s176 = sphi 0, %s174
    %s177 = sphi 0, %s176
    %s191 = sphi 0, %s177
    %s197 = sphi 0, %s199
    %s200 = sphi 0, %s197
    %s201 = sphi 0, %s200
    %s217 = sphi 0, %s201
  $region4: #{inverted_residual_forward.1} parent=0 // loop_header_branch
    %17 = sbr.rel (%p15) target = $region8
  $region5: #{inverted_residual_forward.1} parent=0 // loop_body
    %s19 = ssub.s32 %s14, 1
    %s20 = ssub.s32 %s14, 2
    %s21 = sadd.s32 %s14, 1
    %s22 = ssub.s32 %s14, %s21
    %p23 = scmp.eq.s32.totalorder %s22, 0
    %s25 = sadd.s32 %s24, 1
    %s26 = scalar_select %p23, %s24, %s25
    %p29 = pneg %p23
    %p30 = scmp.eq.s32.totalorder %s14, 1
    %p31 = por %p29, %p30
    %p32 = scmp.ne.s32.totalorder %s24, %s27
    %p33 = scmp.eq.s32.totalorder %s14, 0
    %p34 = por %p32, %p33
    %p35 = scmp.ne.s32.totalorder %s24, %s27
    %p36 = scmp.eq.s32.totalorder %s19, 1
    %p37 = por %p35, %p36
    %p38 = scmp.ne.s32.totalorder %s27, %s28
    %p39 = scmp.eq.s32.totalorder %s19, 0
    %p40 = por %p38, %p39
    %p41 = scmp.ne.s32.totalorder %s27, %s28
    %p42 = scmp.eq.s32.totalorder %s20, 1
    %p43 = por %p41, %p42
    %p45 = scmp.ne.s32.totalorder %s28, %s44
    %p46 = scmp.eq.s32.totalorder %s20, 0
    %p47 = por %p45, %p46
    %s49 = sadd.s32 %s48, 1
    %p52 = scmp.eq.s32.totalorder %s14, 1
    %p53 = scmp.ne.s32.totalorder %s48, %s50
    %p54 = scmp.eq.s32.totalorder %s14, 0
    %p55 = por %p53, %p54
    %p56 = scmp.ne.s32.totalorder %s48, %s50
    %p57 = scmp.eq.s32.totalorder %s19, 1
    %p58 = por %p56, %p57
    %p59 = scmp.ne.s32.totalorder %s50, %s51
    %p60 = scmp.eq.s32.totalorder %s19, 0
    %p61 = por %p59, %p60
    %p62 = scmp.ne.s32.totalorder %s50, %s51
    %p63 = scmp.eq.s32.totalorder %s20, 1
    %p64 = por %p62, %p63
    %p66 = scmp.ne.s32.totalorder %s51, %s65
    %p67 = scmp.eq.s32.totalorder %s20, 0
    %p68 = por %p66, %p67
    %s70 = sadd.s32 %s69, 1
    %p73 = scmp.eq.s32.totalorder %s14, 1
    %p74 = scmp.ne.s32.totalorder %s69, %s71
    %p75 = scmp.eq.s32.totalorder %s14, 0
    %p76 = por %p74, %p75
    %p77 = scmp.ne.s32.totalorder %s69, %s71
    %p78 = scmp.eq.s32.totalorder %s19, 1
    %p79 = por %p77, %p78
    %p80 = scmp.ne.s32.totalorder %s71, %s72
    %p81 = scmp.eq.s32.totalorder %s19, 0
    %p82 = por %p80, %p81
    %p83 = scmp.ne.s32.totalorder %s71, %s72
    %p84 = scmp.eq.s32.totalorder %s20, 1
    %p85 = por %p83, %p84
    %p87 = scmp.ne.s32.totalorder %s72, %s86
    %p88 = scmp.eq.s32.totalorder %s20, 0
    %p89 = por %p87, %p88
    %s91 = sadd.s32 %s90, 1
    %p94 = scmp.eq.s32.totalorder %s14, 1
    %p95 = scmp.ne.s32.totalorder %s90, %s92
    %p96 = scmp.eq.s32.totalorder %s14, 0
    %p97 = por %p95, %p96
    %p98 = scmp.ne.s32.totalorder %s90, %s92
    %p99 = scmp.eq.s32.totalorder %s19, 1
    %p100 = por %p98, %p99
    %p101 = scmp.ne.s32.totalorder %s92, %s93
    %p102 = scmp.eq.s32.totalorder %s19, 0
    %p103 = por %p101, %p102
    %p104 = scmp.ne.s32.totalorder %s92, %s93
    %p105 = scmp.eq.s32.totalorder %s20, 1
    %p106 = por %p104, %p105
    %p108 = scmp.ne.s32.totalorder %s93, %s107
    %p109 = scmp.eq.s32.totalorder %s20, 0
    %p110 = por %p108, %p109
    %s112 = sadd.s32 %s111, 1
    %p115 = scmp.eq.s32.totalorder %s14, 1
    %p116 = scmp.ne.s32.totalorder %s111, %s113
    %p117 = scmp.eq.s32.totalorder %s14, 0
    %p118 = por %p116, %p117
    %p119 = scmp.ne.s32.totalorder %s111, %s113
    %p120 = scmp.eq.s32.totalorder %s19, 1
    %p121 = por %p119, %p120
    %p122 = scmp.ne.s32.totalorder %s113, %s114
    %p123 = scmp.eq.s32.totalorder %s19, 0
    %p124 = por %p122, %p123
    %p125 = scmp.ne.s32.totalorder %s113, %s114
    %p126 = scmp.eq.s32.totalorder %s20, 1
    %p127 = por %p125, %p126
    %p129 = scmp.ne.s32.totalorder %s114, %s128
    %p130 = scmp.eq.s32.totalorder %s20, 0
    %p131 = por %p129, %p130
    %s133 = sadd.s32 %s132, 1
    %p136 = scmp.eq.s32.totalorder %s14, 1
    %p137 = scmp.ne.s32.totalorder %s132, %s134
    %p138 = scmp.eq.s32.totalorder %s14, 0
    %p139 = por %p137, %p138
    %p140 = scmp.ne.s32.totalorder %s132, %s134
    %p141 = scmp.eq.s32.totalorder %s19, 1
    %p142 = por %p140, %p141
    %p143 = scmp.ne.s32.totalorder %s134, %s135
    %p144 = scmp.eq.s32.totalorder %s19, 0
    %p145 = por %p143, %p144
    %p146 = scmp.ne.s32.totalorder %s134, %s135
    %p147 = scmp.eq.s32.totalorder %s20, 1
    %p148 = por %p146, %p147
    %p150 = scmp.ne.s32.totalorder %s135, %s149
    %p151 = scmp.eq.s32.totalorder %s20, 0
    %p152 = por %p150, %p151
    %s154 = sadd.s32 %s153, 1
    %p157 = scmp.eq.s32.totalorder %s14, 1
    %p158 = scmp.ne.s32.totalorder %s153, %s155
    %p159 = scmp.eq.s32.totalorder %s14, 0
    %p160 = por %p158, %p159
    %p161 = scmp.ne.s32.totalorder %s153, %s155
    %p162 = scmp.eq.s32.totalorder %s19, 1
    %p163 = por %p161, %p162
    %p164 = scmp.ne.s32.totalorder %s155, %s156
    %p165 = scmp.eq.s32.totalorder %s19, 0
    %p166 = por %p164, %p165
    %p167 = scmp.ne.s32.totalorder %s155, %s156
    %p168 = scmp.eq.s32.totalorder %s20, 1
    %p169 = por %p167, %p168
    %p171 = scmp.ne.s32.totalorder %s156, %s170
    %p172 = scmp.eq.s32.totalorder %s20, 0
    %p173 = por %p171, %p172
    %s175 = sadd.s32 %s174, 1
    %p178 = scmp.eq.s32.totalorder %s14, 1
    %p179 = scmp.ne.s32.totalorder %s174, %s176
    %p180 = scmp.eq.s32.totalorder %s14, 0
    %p181 = por %p179, %p180
    %p182 = scmp.ne.s32.totalorder %s174, %s176
    %p183 = scmp.eq.s32.totalorder %s19, 1
    %p184 = por %p182, %p183
    %p185 = scmp.ne.s32.totalorder %s176, %s177
    %p186 = scmp.eq.s32.totalorder %s19, 0
    %p187 = por %p185, %p186
    %p188 = scmp.ne.s32.totalorder %s176, %s177
    %p189 = scmp.eq.s32.totalorder %s20, 1
    %p190 = por %p188, %p189
    %p192 = scmp.ne.s32.totalorder %s177, %s191
    %p193 = scmp.eq.s32.totalorder %s20, 0
    %p194 = por %p192, %p193
    %s195 = ssub.s32 %s14, %s21
    %p196 = scmp.eq.s32.totalorder %s195, 0
    %s198 = sadd.s32 %s197, 1
    %s199 = scalar_select %p196, %s197, %s198
    %p202 = pneg %p196
    %p203 = scmp.eq.s32.totalorder %s14, 1
    %p204 = por %p202, %p203
    %p205 = scmp.ne.s32.totalorder %s197, %s200
    %p206 = scmp.eq.s32.totalorder %s14, 0
    %p207 = por %p205, %p206
    %p208 = scmp.ne.s32.totalorder %s197, %s200
    %p209 = scmp.eq.s32.totalorder %s19, 1
    %p210 = por %p208, %p209
    %p211 = scmp.ne.s32.totalorder %s200, %s201
    %p212 = scmp.eq.s32.totalorder %s19, 0
    %p213 = por %p211, %p212
    %p214 = scmp.ne.s32.totalorder %s200, %s201
    %p215 = scmp.eq.s32.totalorder %s20, 1
    %p216 = por %p214, %p215
    %p218 = scmp.ne.s32.totalorder %s201, %s217
    %p219 = scmp.eq.s32.totalorder %s20, 0
    %p220 = por %p218, %p219
    %p221 = scmp.le.s32.totalorder 1, %s14
    %p222 = scmp.lt.s32.totalorder %s14, 3
    %p223 = pnand %p221, %p222
    %p224 = pneg %p223
    // Predicated region
    $region9: #{inverted_residual_forward.1} parent=5 // pred_check
      _
    $region10: #{inverted_residual_forward.1} parent=5 // pred_check_branch
      %226 = sbr.rel (%p223) target = $region12
    $region11: #{inverted_residual_forward.1} parent=5 // pred_region
      %s227 = ssub.s32 %s14, 1
      // Predicated region
      $region13: #{inverted_residual_forward.1} parent=11 // pred_check
        %p228 = pneg %p61
      $region14: #{inverted_residual_forward.1} parent=11 // pred_check_branch
        %230 = sbr.rel (%p228) target = $region16
      $region15: #{inverted_residual_forward.1} parent=11 // pred_region
        _
      $region16: #{inverted_residual_forward.1} parent=11 // pred_fallthru
        _
      // Predicated region
      $region17: #{inverted_residual_forward.1} parent=11 // pred_check
        %p231 = pneg %p82
      $region18: #{inverted_residual_forward.1} parent=11 // pred_check_branch
        %233 = sbr.rel (%p231) target = $region20
      $region19: #{inverted_residual_forward.1} parent=11 // pred_region
        _
      $region20: #{inverted_residual_forward.1} parent=11 // pred_fallthru
        _
      // Predicated region
      $region21: #{inverted_residual_forward.1} parent=11 // pred_check
        %p234 = pneg %p103
      $region22: #{inverted_residual_forward.1} parent=11 // pred_check_branch
        %236 = sbr.rel (%p234) target = $region24
      $region23: #{inverted_residual_forward.1} parent=11 // pred_region
        _
      $region24: #{inverted_residual_forward.1} parent=11 // pred_fallthru
        _
      // Predicated region
      $region25: #{inverted_residual_forward.1} parent=11 // pred_check
        %p237 = pneg %p124
      $region26: #{inverted_residual_forward.1} parent=11 // pred_check_branch
        %239 = sbr.rel (%p237) target = $region28
      $region27: #{inverted_residual_forward.1} parent=11 // pred_region
        _
      $region28: #{inverted_residual_forward.1} parent=11 // pred_fallthru
        _
      // Predicated region
      $region29: #{inverted_residual_forward.1} parent=11 // pred_check
        %p240 = pneg %p145
      $region30: #{inverted_residual_forward.1} parent=11 // pred_check_branch
        %242 = sbr.rel (%p240) target = $region32
      $region31: #{inverted_residual_forward.1} parent=11 // pred_region
        _
      $region32: #{inverted_residual_forward.1} parent=11 // pred_fallthru
        _
      // Predicated region
      $region33: #{inverted_residual_forward.1} parent=11 // pred_check
        %p243 = pneg %p166
      $region34: #{inverted_residual_forward.1} parent=11 // pred_check_branch
        %245 = sbr.rel (%p243) target = $region36
      $region35: #{inverted_residual_forward.1} parent=11 // pred_region
        _
      $region36: #{inverted_residual_forward.1} parent=11 // pred_fallthru
        _
      // Predicated region
      $region37: #{inverted_residual_forward.1} parent=11 // pred_check
        %p246 = pneg %p187
      $region38: #{inverted_residual_forward.1} parent=11 // pred_check_branch
        %248 = sbr.rel (%p246) target = $region40
      $region39: #{inverted_residual_forward.1} parent=11 // pred_region
        _
      $region40: #{inverted_residual_forward.1} parent=11 // pred_fallthru
        _
    $region12: #{inverted_residual_forward.1} parent=5 // pred_fallthru
      _
    %p249 = scmp.lt.s32.totalorder %s14, 2
    // Predicated region
    $region41: #{inverted_residual_forward.1} parent=5 // pred_check
      %p250 = pneg %p249
    $region42: #{inverted_residual_forward.1} parent=5 // pred_check_branch
      %252 = sbr.rel (%p250) target = $region44
    $region43: #{inverted_residual_forward.1} parent=5 // pred_region
      // Predicated region
      $region45: #{inverted_residual_forward.1} parent=43 // pred_check
        %p253 = pneg %p34
      $region46: #{inverted_residual_forward.1} parent=43 // pred_check_branch
        %255 = sbr.rel (%p253) target = $region48
      $region47: #{inverted_residual_forward.1} parent=43 // pred_region
        %p256 = scmp.lt.s32.totalorder %s14, 1
        %s257 = scalar_select %p256, %s14, 1
        %s258 = smul.addr %s257, 2
        %s259 = smul.addr %s258, 4
        %s260 = scalar_lea.vmem %s0, %s259
      $region48: #{inverted_residual_forward.1} parent=43 // pred_fallthru
        _
    $region44: #{inverted_residual_forward.1} parent=5 // pred_fallthru
      _
    %p261 = scmp.le.s32.totalorder 1, %s14
    %p262 = scmp.lt.s32.totalorder %s14, 3
    %p263 = pnand %p261, %p262
    %p264 = pneg %p263
    // Predicated region
    $region49: #{inverted_residual_forward.1} parent=5 // pred_check
      _
    $region50: #{inverted_residual_forward.1} parent=5 // pred_check_branch
      %266 = sbr.rel (%p263) target = $region52
    $region51: #{inverted_residual_forward.1} parent=5 // pred_region
      %s267 = ssub.s32 %s14, 1
      %p268 = scmp.lt.s32.totalorder %s19, 1
      %s269 = scalar_select %p268, %s19, 1
      %s270 = smul.addr %s269, 2
      %s271 = smul.addr %s270, 4
      %s272 = scalar_lea.vmem %s0, %s271
      %p273 = pneg %p40
      %p274 = pneg %p37
      %p275 = pneg %p61
      %p276 = pneg %p58
      %p277 = pneg %p82
      %p278 = pneg %p79
      %p279 = pneg %p103
      %p280 = pneg %p100
      %p281 = pneg %p124
      %p282 = pneg %p121
      %p283 = pneg %p145
      %p284 = pneg %p142
      %p285 = pneg %p166
      %p286 = pneg %p163
      %p287 = pneg %p187
      %p288 = pneg %p184
      %p289 = pneg %p213
      %p290 = pneg %p210
      %p291 = scmp.lt.s32.totalorder %s19, 1
      %s292 = scalar_select %p291, %s19, 1
      %s293 = smul.addr %s292, 2
      %s294 = smul.addr %s293, 4
      %s295 = scalar_lea.vmem %s8, %s294
      %p296 = scmp.lt.s32.totalorder %s19, 1
      %s297 = scalar_select %p296, %s19, 1
      %s298 = smul.addr %s297, 2
      %s299 = smul.addr %s298, 4
      %s300 = scalar_lea.vmem %s0, %s299
      %p301 = scmp.lt.s32.totalorder %s19, 1
      %s302 = scalar_select %p301, %s19, 1
      %s303 = smul.addr %s302, 2
      %s304 = smul.addr %s303, 4
      %s305 = scalar_lea.vmem %s8, %s304
      %v306 = vld [vmem:[%s300] sm:$0xff]
      %v307 = vld [vmem:[%s2] sm:$0xff]
      %309 = vset.pattern.permute.xlu0 0
      %310 = vperm.xlu0 %309, %v307
      %v311 = vpop.permute.xlu0 %310
      %v314 = vlaneseq
      %v315 = vshrl.u32 %v314, 7
      %v316 = vsub.s32 0, %v315
      %v317 = vrot.slane %v306, %v316
      %v318 = vlaneseq
      %v319 = vshrl.u32 %v318, 7
      %v320 = vsub.s32 4, %v319
      %v321 = vrot.slane %v306, %v320
      %v324 = vlaneseq
      %v325 = vshrl.u32 %v324, 7
      %v326 = vsub.s32 0, %v325
      %v327 = vrot.slane %v317, %v326
      %v328 = vlaneseq
      %v329 = vshrl.u32 %v328, 7
      %v330 = vsub.s32 0, %v329
      %v331 = vrot.slane %v321, %v330
      %v332 = vmul.f32 %v311, %v327
      %v333 = vmul.f32 %v311, %v331
      %334 = vset.pattern.permute.xlu0 1
      %335 = vperm.xlu0 %334, %v307
      %v336 = vpop.permute.xlu0 %335
      %v338 = vlaneseq
      %v339 = vshrl.u32 %v338, 7
      %v340 = vsub.s32 1, %v339
      %v341 = vrot.slane %v306, %v340
      %v342 = vlaneseq
      %v343 = vshrl.u32 %v342, 7
      %v344 = vsub.s32 5, %v343
      %v345 = vrot.slane %v306, %v344
      %v348 = vlaneseq
      %v349 = vshrl.u32 %v348, 7
      %v350 = vsub.s32 1, %v349
      %v351 = vrot.slane %v341, %v350
      %v352 = vlaneseq
      %v353 = vshrl.u32 %v352, 7
      %v354 = vsub.s32 1, %v353
      %v355 = vrot.slane %v345, %v354
      %v356 = vmul.f32 %v336, %v351
      %v357 = vmul.f32 %v336, %v355
      %v358 = vadd.f32 %v332, %v356
      %v359 = vadd.f32 %v333, %v357
      %360 = vset.pattern.permute.xlu0 2
      %361 = vperm.xlu0 %360, %v307
      %v362 = vpop.permute.xlu0 %361
      %v364 = vlaneseq
      %v365 = vshrl.u32 %v364, 7
      %v366 = vsub.s32 2, %v365
      %v367 = vrot.slane %v306, %v366
      %v368 = vlaneseq
      %v369 = vshrl.u32 %v368, 7
      %v370 = vsub.s32 6, %v369
      %v371 = vrot.slane %v306, %v370
      %v374 = vlaneseq
      %v375 = vshrl.u32 %v374, 7
      %v376 = vsub.s32 2, %v375
      %v377 = vrot.slane %v367, %v376
      %v378 = vlaneseq
      %v379 = vshrl.u32 %v378, 7
      %v380 = vsub.s32 2, %v379
      %v381 = vrot.slane %v371, %v380
      %v382 = vmul.f32 %v362, %v377
      %v383 = vmul.f32 %v362, %v381
      %v384 = vadd.f32 %v358, %v382
      %v385 = vadd.f32 %v359, %v383
      %386 = vset.pattern.permute.xlu0 3
      %387 = vperm.xlu0 %386, %v307
      %v388 = vpop.permute.xlu0 %387
      %v390 = vlaneseq
      %v391 = vshrl.u32 %v390, 7
      %v392 = vsub.s32 3, %v391
      %v393 = vrot.slane %v306, %v392
      %v394 = vlaneseq
      %v395 = vshrl.u32 %v394, 7
      %v396 = vsub.s32 7, %v395
      %v397 = vrot.slane %v306, %v396
      %v400 = vlaneseq
      %v401 = vshrl.u32 %v400, 7
      %v402 = vsub.s32 3, %v401
      %v403 = vrot.slane %v393, %v402
      %v404 = vlaneseq
      %v405 = vshrl.u32 %v404, 7
      %v406 = vsub.s32 3, %v405
      %v407 = vrot.slane %v397, %v406
      %v408 = vmul.f32 %v388, %v403
      %v409 = vmul.f32 %v388, %v407
      %v410 = vadd.f32 %v384, %v408
      %v411 = vadd.f32 %v385, %v409
      %v412 = vld [vmem:[%s3] sm:$0xff]
      %414 = vset.pattern.permute.xlu0 0
      %415 = vperm.xlu0 %414, %v412
      %v416 = vpop.permute.xlu0 %415
      %v418 = vadd.f32 %v410, %v416
      %v419 = vadd.f32 %v411, %v416
      %v420 = vmax.f32 %v418, 0.0
      %v421 = vmax.f32 %v419, 0.0
      %v422 = vmin.f32 %v420, 6.0
      %v423 = vmin.f32 %v421, 6.0
      %424 = vst [vmem:[#allocation2] sm:$0xff] 0.0
      %425 = vst [vmem:[#allocation2 + $0x8] sm:$0xff] 0.0
      %426 = vst [vmem:[#allocation2 + $0x10] sm:$0xff] 0.0
      %427 = vst [vmem:[#allocation2 + $0x18] sm:$0xff] 0.0
      %428 = vst [vmem:[#allocation2 + $0x8] sm:$0xff] %v422
      %429 = vst [vmem:[#allocation2 + $0x10] sm:$0xff] %v423
      %v430 = vld [vmem:[#allocation2] sm:$0xff]
      %v431 = vld [vmem:[#allocation2 + $0x8] sm:$0xff]
      %v432 = vld [vmem:[#allocation2 + $0x10] sm:$0xff]
      %v433 = vld [vmem:[#allocation2 + $0x18] sm:$0xff]
      %v434 = vld [vmem:[%s1] sm:$0x77]
      %v435 = vld [vmem:[%s4] sm:$0xff]
      %v437 = vlaneseq
      %v438 = vshrl.u32 %v437, 7
      %v439 = vsub.s32 0, %v438
      %v440 = vrot.slane %v434, %v439
      %v441 = vlaneseq
      %v442 = vshrl.u32 %v441, 7
      %v443 = vsub.s32 4, %v442
      %v444 = vrot.slane %v434, %v443
      %v447 = vlaneseq
      %v448 = vshrl.u32 %v447, 7
      %v449 = vsub.s32 0, %v448
      %v450 = vrot.slane %v440, %v449
      %v451 = vlaneseq
      %v452 = vshrl.u32 %v451, 7
      %v453 = vsub.s32 0, %v452
      %v454 = vrot.slane %v444, %v453
      %457 = vrot.lane.b32.xlu0 %v450, 111
      %v458 = vpop.permute.xlu0 %457
      %459 = vrot.lane.b32.xlu0 %v454, 111
      %v460 = vpop.permute.xlu0 %459
      %vm461 = vcmask 908288
      %v462 = vsel %vm461, %v458, %v460
      %v466 = vmul.f32 %v430, %v458
      %v467 = vmul.f32 %v431, %v462
      %v468 = vmul.f32 %v432, %v460
      %470 = vset.pattern.permute.xlu0 0
      %471 = vperm.xlu0 %470, %v435
      %v472 = vpop.permute.xlu0 %471
      %v474 = vmul.f32 %v466, %v472
      %v475 = vmul.f32 %v467, %v472
      %v476 = vmul.f32 %v468, %v472
      %v477 = vadd.f32 %v474, 0.0
      %v478 = vadd.f32 %v475, 0.0
      %v479 = vadd.f32 %v476, 0.0
      %480 = vset.pattern.permute.xlu0 1
      %481 = vperm.xlu0 %480, %v435
      %v482 = vpop.permute.xlu0 %481
      %v484 = vmul.f32 %v430, %v482
      %v485 = vmul.f32 %v431, %v482
      %v486 = vmul.f32 %v432, %v482
      %490 = vrot.lane.b32.xlu0 %v484, 127
      %v491 = vpop.permute.xlu0 %490
      %492 = vrot.lane.b32.xlu0 %v485, 127
      %v493 = vpop.permute.xlu0 %492
      %494 = vrot.lane.b32.xlu0 %v486, 127
      %v495 = vpop.permute.xlu0 %494
      %vm496 = vcmask 1039360
      %v497 = vsel %vm496, %v491, %v493
      %v498 = vsel %vm496, %v493, %v495
      %v502 = vadd.f32 %v477, %v497
      %v503 = vadd.f32 %v478, %v498
      %v504 = vadd.f32 %v479, %v495
      %v505 = vlaneseq
      %v506 = vshrl.u32 %v505, 7
      %v507 = vsub.s32 2, %v506
      %v508 = vrot.slane %v434, %v507
      %v509 = vlaneseq
      %v510 = vshrl.u32 %v509, 7
      %v511 = vsub.s32 6, %v510
      %v512 = vrot.slane %v434, %v511
      %v515 = vlaneseq
      %v516 = vshrl.u32 %v515, 7
      %v517 = vsub.s32 2, %v516
      %v518 = vrot.slane %v508, %v517
      %v519 = vlaneseq
      %v520 = vshrl.u32 %v519, 7
      %v521 = vsub.s32 2, %v520
      %v522 = vrot.slane %v512, %v521
      %525 = vrot.lane.b32.xlu0 %v518, 113
      %v526 = vpop.permute.xlu0 %525
      %527 = vrot.lane.b32.xlu0 %v522, 113
      %v528 = vpop.permute.xlu0 %527
      %vm529 = vcmask 924672
      %v530 = vsel %vm529, %v526, %v528
      %v534 = vmul.f32 %v430, %v526
      %v535 = vmul.f32 %v431, %v530
      %v536 = vmul.f32 %v432, %v528
      %537 = vset.pattern.permute.xlu0 2
      %538 = vperm.xlu0 %537, %v435
      %v539 = vpop.permute.xlu0 %538
      %v541 = vmul.f32 %v534, %v539
      %v542 = vmul.f32 %v535, %v539
      %v543 = vmul.f32 %v536, %v539
      %547 = vrot.lane.b32.xlu0 %v541, 126
      %v548 = vpop.permute.xlu0 %547
      %549 = vrot.lane.b32.xlu0 %v542, 126
      %v550 = vpop.permute.xlu0 %549
      %551 = vrot.lane.b32.xlu0 %v543, 126
      %v552 = vpop.permute.xlu0 %551
      %vm553 = vcmask 1031168
      %v554 = vsel %vm553, %v548, %v550
      %v555 = vsel %vm553, %v550, %v552
      %v559 = vadd.f32 %v502, %v554
      %v560 = vadd.f32 %v503, %v555
      %v561 = vadd.f32 %v504, %v552
      %562 = vrot.lane.b32.xlu0 %v450, 127
      %v563 = vpop.permute.xlu0 %562
      %564 = vrot.lane.b32.xlu0 %v454, 127
      %v565 = vpop.permute.xlu0 %564
      %v566 = vsel %vm496, %v563, %v565
      %v570 = vmul.f32 %v430, %v563
      %v571 = vmul.f32 %v431, %v566
      %v572 = vmul.f32 %v432, %v565
      %573 = vset.pattern.permute.xlu0 3
      %574 = vperm.xlu0 %573, %v435
      %v575 = vpop.permute.xlu0 %574
      %v577 = vmul.f32 %v570, %v575
      %v578 = vmul.f32 %v571, %v575
      %v579 = vmul.f32 %v572, %v575
      %583 = vrot.lane.b32.xlu0 %v577, 112
      %v584 = vpop.permute.xlu0 %583
      %585 = vrot.lane.b32.xlu0 %v578, 112
      %v586 = vpop.permute.xlu0 %585
      %587 = vrot.lane.b32.xlu0 %v579, 112
      %v588 = vpop.permute.xlu0 %587
      %vm589 = vcmask 916480
      %v590 = vsel %vm589, %v584, %v586
      %v591 = vsel %vm589, %v586, %v588
      %v595 = vadd.f32 %v559, %v590
      %v596 = vadd.f32 %v560, %v591
      %v597 = vadd.f32 %v561, %v588
      %598 = vset.pattern.permute.xlu0 4
      %599 = vperm.xlu0 %598, %v435
      %v600 = vpop.permute.xlu0 %599
      %v602 = vmul.f32 %v431, %v600
      %v603 = vmul.f32 %v432, %v600
      %606 = vrot.lane.b32.xlu0 %v602, 111
      %v607 = vpop.permute.xlu0 %606
      %608 = vrot.lane.b32.xlu0 %v603, 111
      %v609 = vpop.permute.xlu0 %608
      %v610 = vsel %vm461, %v607, %v609
      %v614 = vadd.f32 %v595, %v607
      %v615 = vadd.f32 %v596, %v610
      %v616 = vadd.f32 %v597, %v609
      %617 = vrot.lane.b32.xlu0 %v518, 1
      %v618 = vpop.permute.xlu0 %617
      %619 = vrot.lane.b32.xlu0 %v522, 1
      %v620 = vpop.permute.xlu0 %619
      %vm621 = vcmask 7168
      %v622 = vsel %vm621, %v618, %v620
      %v626 = vmul.f32 %v431, %v618
      %v627 = vmul.f32 %v432, %v622
      %v628 = vmul.f32 %v433, %v620
      %629 = vset.pattern.permute.xlu0 5
      %630 = vperm.xlu0 %629, %v435
      %v631 = vpop.permute.xlu0 %630
      %v633 = vmul.f32 %v626, %v631
      %v634 = vmul.f32 %v627, %v631
      %v635 = vmul.f32 %v628, %v631
      %639 = vrot.lane.b32.xlu0 %v633, 110
      %v640 = vpop.permute.xlu0 %639
      %641 = vrot.lane.b32.xlu0 %v634, 110
      %v642 = vpop.permute.xlu0 %641
      %643 = vrot.lane.b32.xlu0 %v635, 110
      %v644 = vpop.permute.xlu0 %643
      %vm645 = vcmask 900096
      %v646 = vsel %vm645, %v640, %v642
      %v647 = vsel %vm645, %v642, %v644
      %v651 = vadd.f32 %v614, %v640
      %v652 = vadd.f32 %v615, %v646
      %v653 = vadd.f32 %v616, %v647
      %654 = vrot.lane.b32.xlu0 %v450, 15
      %v655 = vpop.permute.xlu0 %654
      %656 = vrot.lane.b32.xlu0 %v454, 15
      %v657 = vpop.permute.xlu0 %656
      %vm658 = vcmask 121856
      %v659 = vsel %vm658, %v655, %v657
      %v663 = vmul.f32 %v431, %v655
      %v664 = vmul.f32 %v432, %v659
      %v665 = vmul.f32 %v433, %v657
      %666 = vset.pattern.permute.xlu0 6
      %667 = vperm.xlu0 %666, %v435
      %v668 = vpop.permute.xlu0 %667
      %v670 = vmul.f32 %v663, %v668
      %v671 = vmul.f32 %v664, %v668
      %v672 = vmul.f32 %v665, %v668
      %676 = vrot.lane.b32.xlu0 %v670, 96
      %v677 = vpop.permute.xlu0 %676
      %678 = vrot.lane.b32.xlu0 %v671, 96
      %v679 = vpop.permute.xlu0 %678
      %680 = vrot.lane.b32.xlu0 %v672, 96
      %v681 = vpop.permute.xlu0 %680
      %vm682 = vcmask 785408
      %v683 = vsel %vm682, %v677, %v679
      %v684 = vsel %vm682, %v679, %v681
      %v688 = vadd.f32 %v651, %v677
      %v689 = vadd.f32 %v652, %v683
      %v690 = vadd.f32 %v653, %v684
      %691 = vset.pattern.permute.xlu0 7
      %692 = vperm.xlu0 %691, %v435
      %v693 = vpop.permute.xlu0 %692
      %v695 = vmul.f32 %v431, %v693
      %v696 = vmul.f32 %v432, %v693
      %v697 = vmul.f32 %v433, %v693
      %701 = vrot.lane.b32.xlu0 %v695, 95
      %v702 = vpop.permute.xlu0 %701
      %703 = vrot.lane.b32.xlu0 %v696, 95
      %v704 = vpop.permute.xlu0 %703
      %705 = vrot.lane.b32.xlu0 %v697, 95
      %v706 = vpop.permute.xlu0 %705
      %vm707 = vcmask 777216
      %v708 = vsel %vm707, %v702, %v704
      %v709 = vsel %vm707, %v704, %v706
      %v713 = vadd.f32 %v688, %v702
      %v714 = vadd.f32 %v689, %v708
      %v715 = vadd.f32 %v690, %v709
      %716 = vrot.lane.b32.xlu0 %v518, 17
      %v717 = vpop.permute.xlu0 %716
      %718 = vrot.lane.b32.xlu0 %v522, 17
      %v719 = vpop.permute.xlu0 %718
      %vm720 = vcmask 138240
      %v721 = vsel %vm720, %v717, %v719
      %v725 = vmul.f32 %v431, %v717
      %v726 = vmul.f32 %v432, %v721
      %v727 = vmul.f32 %v433, %v719
      %728 = vset.pattern.permute.xlu0 8
      %729 = vperm.xlu0 %728, %v435
      %v730 = vpop.permute.xlu0 %729
      %v732 = vmul.f32 %v725, %v730
      %v733 = vmul.f32 %v726, %v730
      %v734 = vmul.f32 %v727, %v730
      %738 = vrot.lane.b32.xlu0 %v732, 94
      %v739 = vpop.permute.xlu0 %738
      %740 = vrot.lane.b32.xlu0 %v733, 94
      %v741 = vpop.permute.xlu0 %740
      %742 = vrot.lane.b32.xlu0 %v734, 94
      %v743 = vpop.permute.xlu0 %742
      %vm744 = vcmask 769024
      %v745 = vsel %vm744, %v739, %v741
      %v746 = vsel %vm744, %v741, %v743
      %v750 = vadd.f32 %v713, %v739
      %v751 = vadd.f32 %v714, %v745
      %v752 = vadd.f32 %v715, %v746
      %v753 = vld [vmem:[%s5] sm:$0xff]
      %755 = vset.pattern.permute.xlu0 0
      %756 = vperm.xlu0 %755, %v753
      %v757 = vpop.permute.xlu0 %756
      %v759 = vadd.f32 %v750, %v757
      %v760 = vadd.f32 %v751, %v757
      %v761 = vadd.f32 %v752, %v757
      %v762 = vmax.f32 %v759, 0.0
      %v763 = vmax.f32 %v760, 0.0
      %v764 = vmax.f32 %v761, 0.0
      %v765 = vmin.f32 %v762, 6.0
      %v766 = vmin.f32 %v763, 6.0
      %v767 = vmin.f32 %v764, 6.0
      %v768 = vld [vmem:[%s6] sm:$0xf]
      %770 = vset.pattern.permute.xlu0 0
      %771 = vperm.xlu0 %770, %v768
      %v772 = vpop.permute.xlu0 %771
      %v774 = vlaneseq
      %v775 = vshrl.u32 %v774, 7
      %v776 = vsub.s32 0, %v775
      %v777 = vrot.slane %v765, %v776
      %v778 = vlaneseq
      %v779 = vshrl.u32 %v778, 7
      %v780 = vsub.s32 0, %v779
      %v781 = vrot.slane %v766, %v780
      %v782 = vlaneseq
      %v783 = vshrl.u32 %v782, 7
      %v784 = vsub.s32 0, %v783
      %v785 = vrot.slane %v767, %v784
      %v786 = vmul.f32 %v772, %v777
      %v787 = vmul.f32 %v772, %v781
      %v788 = vmul.f32 %v772, %v785
      %789 = vset.pattern.permute.xlu0 1
      %790 = vperm.xlu0 %789, %v768
      %v791 = vpop.permute.xlu0 %790
      %v793 = vlaneseq
      %v794 = vshrl.u32 %v793, 7
      %v795 = vsub.s32 1, %v794
      %v796 = vrot.slane %v765, %v795
      %v797 = vlaneseq
      %v798 = vshrl.u32 %v797, 7
      %v799 = vsub.s32 1, %v798
      %v800 = vrot.slane %v766, %v799
      %v801 = vlaneseq
      %v802 = vshrl.u32 %v801, 7
      %v803 = vsub.s32 1, %v802
      %v804 = vrot.slane %v767, %v803
      %v805 = vmul.f32 %v791, %v796
      %v806 = vmul.f32 %v791, %v800
      %v807 = vmul.f32 %v791, %v804
      %v808 = vadd.f32 %v786, %v805
      %v809 = vadd.f32 %v787, %v806
      %v810 = vadd.f32 %v788, %v807
      %811 = vset.pattern.permute.xlu0 2
      %812 = vperm.xlu0 %811, %v768
      %v813 = vpop.permute.xlu0 %812
      %v815 = vlaneseq
      %v816 = vshrl.u32 %v815, 7
      %v817 = vsub.s32 2, %v816
      %v818 = vrot.slane %v765, %v817
      %v819 = vlaneseq
      %v820 = vshrl.u32 %v819, 7
      %v821 = vsub.s32 2, %v820
      %v822 = vrot.slane %v766, %v821
      %v823 = vlaneseq
      %v824 = vshrl.u32 %v823, 7
      %v825 = vsub.s32 2, %v824
      %v826 = vrot.slane %v767, %v825
      %v827 = vmul.f32 %v813, %v818
      %v828 = vmul.f32 %v813, %v822
      %v829 = vmul.f32 %v813, %v826
      %v830 = vadd.f32 %v808, %v827
      %v831 = vadd.f32 %v809, %v828
      %v832 = vadd.f32 %v810, %v829
      %833 = vset.pattern.permute.xlu0 3
      %834 = vperm.xlu0 %833, %v768
      %v835 = vpop.permute.xlu0 %834
      %v837 = vlaneseq
      %v838 = vshrl.u32 %v837, 7
      %v839 = vsub.s32 3, %v838
      %v840 = vrot.slane %v765, %v839
      %v841 = vlaneseq
      %v842 = vshrl.u32 %v841, 7
      %v843 = vsub.s32 3, %v842
      %v844 = vrot.slane %v766, %v843
      %v845 = vlaneseq
      %v846 = vshrl.u32 %v845, 7
      %v847 = vsub.s32 3, %v846
      %v848 = vrot.slane %v767, %v847
      %v849 = vmul.f32 %v835, %v840
      %v850 = vmul.f32 %v835, %v844
      %v851 = vmul.f32 %v835, %v848
      %v852 = vadd.f32 %v830, %v849
      %v853 = vadd.f32 %v831, %v850
      %v854 = vadd.f32 %v832, %v851
      %855 = vset.pattern.permute.xlu0 4
      %856 = vperm.xlu0 %855, %v768
      %v857 = vpop.permute.xlu0 %856
      %v859 = vlaneseq
      %v860 = vshrl.u32 %v859, 7
      %v861 = vsub.s32 4, %v860
      %v862 = vrot.slane %v765, %v861
      %v863 = vlaneseq
      %v864 = vshrl.u32 %v863, 7
      %v865 = vsub.s32 4, %v864
      %v866 = vrot.slane %v766, %v865
      %v867 = vlaneseq
      %v868 = vshrl.u32 %v867, 7
      %v869 = vsub.s32 4, %v868
      %v870 = vrot.slane %v767, %v869
      %v871 = vmul.f32 %v857, %v862
      %v872 = vmul.f32 %v857, %v866
      %v873 = vmul.f32 %v857, %v870
      %v874 = vadd.f32 %v852, %v871
      %v875 = vadd.f32 %v853, %v872
      %v876 = vadd.f32 %v854, %v873
      %877 = vset.pattern.permute.xlu0 5
      %878 = vperm.xlu0 %877, %v768
      %v879 = vpop.permute.xlu0 %878
      %v881 = vlaneseq
      %v882 = vshrl.u32 %v881, 7
      %v883 = vsub.s32 5, %v882
      %v884 = vrot.slane %v765, %v883
      %v885 = vlaneseq
      %v886 = vshrl.u32 %v885, 7
      %v887 = vsub.s32 5, %v886
      %v888 = vrot.slane %v766, %v887
      %v889 = vlaneseq
      %v890 = vshrl.u32 %v889, 7
      %v891 = vsub.s32 5, %v890
      %v892 = vrot.slane %v767, %v891
      %v893 = vmul.f32 %v879, %v884
      %v894 = vmul.f32 %v879, %v888
      %v895 = vmul.f32 %v879, %v892
      %v896 = vadd.f32 %v874, %v893
      %v897 = vadd.f32 %v875, %v894
      %v898 = vadd.f32 %v876, %v895
      %899 = vset.pattern.permute.xlu0 6
      %900 = vperm.xlu0 %899, %v768
      %v901 = vpop.permute.xlu0 %900
      %v903 = vlaneseq
      %v904 = vshrl.u32 %v903, 7
      %v905 = vsub.s32 6, %v904
      %v906 = vrot.slane %v765, %v905
      %v907 = vlaneseq
      %v908 = vshrl.u32 %v907, 7
      %v909 = vsub.s32 6, %v908
      %v910 = vrot.slane %v766, %v909
      %v911 = vlaneseq
      %v912 = vshrl.u32 %v911, 7
      %v913 = vsub.s32 6, %v912
      %v914 = vrot.slane %v767, %v913
      %v915 = vmul.f32 %v901, %v906
      %v916 = vmul.f32 %v901, %v910
      %v917 = vmul.f32 %v901, %v914
      %v918 = vadd.f32 %v896, %v915
      %v919 = vadd.f32 %v897, %v916
      %v920 = vadd.f32 %v898, %v917
      %921 = vset.pattern.permute.xlu0 7
      %922 = vperm.xlu0 %921, %v768
      %v923 = vpop.permute.xlu0 %922
      %v925 = vlaneseq
      %v926 = vshrl.u32 %v925, 7
      %v927 = vsub.s32 7, %v926
      %v928 = vrot.slane %v765, %v927
      %v929 = vlaneseq
      %v930 = vshrl.u32 %v929, 7
      %v931 = vsub.s32 7, %v930
      %v932 = vrot.slane %v766, %v931
      %v933 = vlaneseq
      %v934 = vshrl.u32 %v933, 7
      %v935 = vsub.s32 7, %v934
      %v936 = vrot.slane %v767, %v935
      %v937 = vmul.f32 %v923, %v928
      %v938 = vmul.f32 %v923, %v932
      %v939 = vmul.f32 %v923, %v936
      %v940 = vadd.f32 %v918, %v937
      %v941 = vadd.f32 %v919, %v938
      %v942 = vadd.f32 %v920, %v939
      %v943 = vld [vmem:[%s7] sm:$0xf]
      %945 = vset.pattern.permute.xlu0 0
      %946 = vperm.xlu0 %945, %v943
      %v947 = vpop.permute.xlu0 %946
      %v949 = vadd.f32 %v940, %v947
      %v950 = vadd.f32 %v941, %v947
      %v951 = vadd.f32 %v942, %v947
      %v952 = vcombine.high %v306, %v306
      %953 = vrot.lane.b32.xlu0 %v306, 111
      %v954 = vpop.permute.xlu0 %953
      %955 = vrot.lane.b32.xlu0 %v952, 111
      %v956 = vpop.permute.xlu0 %955
      %v957 = vsel %vm461, %v954, %v956
      %v961 = vadd.f32 %v949, %v954
      %v962 = vadd.f32 %v950, %v957
      %v963 = vadd.f32 %v951, %v956
      %v967 = vcombine.low %v961, %v962
      %968 = vrot.lane.b32.xlu0 %v967, 17
      %v969 = vpop.permute.xlu0 %968
      %970 = vrot.lane.b32.xlu0 %v963, 17
      %v971 = vpop.permute.xlu0 %970
      %v972 = vrot.slane %v969, 4
      %v973 = vrot.slane %v971, 4
      %vm974 = vcmask 1043456
      %v975 = vsel %vm974, %v972, %v973
      %v976 = vsel %vm720, %v969, %v975
      %978 = vst [vmem:[%s305] sm:$0xff] %v976
      %p979 = scmp.lt.s32.totalorder %s19, 1
      %s980 = scalar_select %p979, %s19, 1
      %s981 = smul.addr %s980, 2
      %s982 = smul.addr %s981, 4
      %s983 = scalar_lea.vmem %s8, %s982
      // Predicated region
      $region53: #{inverted_residual_forward.1} parent=51 // pred_check
        %p984 = pneg %p210
      $region54: #{inverted_residual_forward.1} parent=51 // pred_check_branch
        %986 = sbr.rel (%p984) target = $region56
      $region55: #{inverted_residual_forward.1} parent=51 // pred_region
        _
      $region56: #{inverted_residual_forward.1} parent=51 // pred_fallthru
        _
    $region52: #{inverted_residual_forward.1} parent=5 // pred_fallthru
      _
    %p987 = scmp.le.s32.totalorder 2, %s14
    // Predicated region
    $region57: #{inverted_residual_forward.1} parent=5 // pred_check
      %p988 = pneg %p987
    $region58: #{inverted_residual_forward.1} parent=5 // pred_check_branch
      %990 = sbr.rel (%p988) target = $region60
    $region59: #{inverted_residual_forward.1} parent=5 // pred_region
      %s991 = ssub.s32 %s14, 2
      // Predicated region
      $region61: #{inverted_residual_forward.1} parent=59 // pred_check
        %p992 = pneg %p216
      $region62: #{inverted_residual_forward.1} parent=59 // pred_check_branch
        %994 = sbr.rel (%p992) target = $region64
      $region63: #{inverted_residual_forward.1} parent=59 // pred_region
        %p995 = scmp.lt.s32.totalorder %s20, 1
        %s996 = scalar_select %p995, %s20, 1
        %s997 = smul.addr %s996, 2
        %s998 = smul.addr %s997, 4
        %s999 = scalar_lea.vmem %s8, %s998
      $region64: #{inverted_residual_forward.1} parent=59 // pred_fallthru
        _
    $region60: #{inverted_residual_forward.1} parent=5 // pred_fallthru
      _
  $region6: #{inverted_residual_forward.1} parent=0 // loop_footer
    %s18 = sadd.s32 1, %s14
  $region7: #{inverted_residual_forward.1} parent=0 // loop_footer_branch
    %13 = sbr.rel target = $region3
  $region8: #{inverted_residual_forward.1} parent=0 // loop_exit
    _

</llo_original>
